<compile_context>
chip_gen: v5e
topology: v5e:2x2
jax: 0.10.0
libtpu: 0.0.40
codegen_flags: <defaults>
</compile_context>

<pallas_src>
import jax
import jax.numpy as jnp
from jax import lax
from jax.experimental import pallas as pl
from jax.experimental.pallas import tpu as pltpu

_MIB = 1024 * 1024


def _rmsnorm_kernel(eps):
    def kernel(x_ref, w1p_ref, o_ref):
        # f32 accumulation and f32 final scale (matches x.float() in PyTorch):
        # a single rounding back to the input dtype at the end.
        xf = x_ref[...].astype(jnp.float32)
        mean_sq = jnp.mean(xf * xf, axis=-1, keepdims=True)   # (tile, 1) f32
        inv = lax.rsqrt(mean_sq + eps)                         # (tile, 1) f32
        o_ref[...] = (xf * inv * w1p_ref[...]).astype(o_ref.dtype)
    return kernel


def _tpu_generation_constants():
    """Return (vmem_limit_bytes, vmem_budget_bytes, num_tensorcores)."""
    vmem_cap = None
    try:
        info = pltpu.get_tpu_info()
        vmem_cap = getattr(info, "vmem_capacity_bytes", None)
    except Exception:
        vmem_cap = None
    if vmem_cap is None:
        vmem_cap = 128 * _MIB  # assume v5e/v6e-class if the query is unavailable
    if vmem_cap <= 64 * _MIB:
        # v7x: 64 MiB VMEM per TensorCore, 2 TCs per chip -> modest limit,
        # tighter per-step budget, and shard the grid across both cores.
        return 32 * _MIB, 14 * _MIB, 2
    # v5e / v6e: 128 MiB VMEM, single TensorCore -> larger blocks allowed.
    return 64 * _MIB, 28 * _MIB, 1


def _choose_row_tile(rows, dim, itemsize, vmem_budget, num_tc,
                     target_block_bytes=3 * _MIB):
    """Row tile: ~3 MiB of input per block, VMEM-budgeted, multiple of 16."""
    if rows <= 16:
        # Full-array block along rows (allowed even if not a multiple of 8).
        return rows
    # VMEM bytes per row of tile: double-buffered input + output plus roughly
    # three f32-block temporaries from the normalization math.
    bytes_per_row = dim * (4 * itemsize + 12)
    max_by_budget = max(16, vmem_budget // bytes_per_row)
    by_target = max(16, target_block_bytes // (dim * itemsize))
    tile = min(by_target, max_by_budget, rows)
    tile = max(16, (tile // 16) * 16)
    if num_tc > 1:
        # v7x megacore: aim for >= 2 blocks per TensorCore so each core keeps
        # its own DMA/compute overlap; never shrink below 16 rows.
        min_steps = 2 * num_tc
        while tile > 16 and -(-rows // tile) < min_steps:
            tile = max(16, ((tile // 2) // 16) * 16)
    return tile


def physionet_rmsnorm(x, weight, eps=1e-6):
    """RMSNorm over the last axis: x * rsqrt(mean(x^2, -1) + eps) * (1 + w)."""
    orig_shape = x.shape
    dim = orig_shape[-1]
    assert weight.shape == (dim,)

    rows = 1
    for s in orig_shape[:-1]:
        rows *= s
    x2d = x.reshape(rows, dim)                      # collapse leading dims
    # Precompute (1 + weight) once, in f32 (the precision the final multiply
    # uses); removes a per-grid-step VPU add + cast inside the kernel.
    w1p = (1.0 + weight.astype(jnp.float32)).reshape(1, dim)

    vmem_limit, vmem_budget, num_tc = _tpu_generation_constants()
    tile = _choose_row_tile(rows, dim, jnp.dtype(x.dtype).itemsize,
                            vmem_budget, num_tc)
    grid = (-(-rows // tile),)  # cdiv; ragged last block handled by Pallas

    # TODO(synk): on v7x, try pipeline_mode=pl.Buffered(3) on the input spec
    # if an xprof trace shows inter-step DMA gaps (re-check VMEM accounting).
    out2d = pl.pallas_call(
        _rmsnorm_kernel(float(eps)),
        out_shape=jax.ShapeDtypeStruct((rows, dim), x.dtype),
        grid_spec=pltpu.PrefetchScalarGridSpec(
            num_scalar_prefetch=0,
            grid=grid,
            in_specs=[
                pl.BlockSpec((tile, dim), lambda i: (i, 0)),
                pl.BlockSpec((1, dim), lambda i: (0, 0)),
            ],
            out_specs=pl.BlockSpec((tile, dim), lambda i: (i, 0)),
        ),
        compiler_params=pltpu.CompilerParams(
            dimension_semantics=("parallel",),
            vmem_limit_bytes=vmem_limit,
        ),
    )(x2d, w1p)

    return out2d.reshape(orig_shape)


def _reference(x, weight, eps=1e-6):
    xf = x.astype(jnp.float32)
    norm = xf * lax.rsqrt(jnp.mean(xf * xf, axis=-1, keepdims=True) + eps)
    out = norm * (1.0 + weight.astype(jnp.float32))
    return out.astype(x.dtype)


# TODO(synk): attention / MLP / embedding / lm_head of PhysionetForCausalLM are
# not kernelized here; this kernel covers the PhysionetRMSNorm sub-module used
# throughout the model (2x per decoder layer + final norm).
# TODO(synk): to beat the HBM roofline (~0.5 flop/byte), fuse this norm into
# the consuming QKV / gate-up projection (apply inv and (1+w) while loading the
# LHS tile of that matmul) instead of tuning this standalone kernel further.

if __name__ == "__main__":
    key = jax.random.PRNGKey(0)
    k1, k2, k3, k4 = jax.random.split(key, 4)

    # Test 1: bf16 activations, zero-init weight (module default), rows=16.
    batch, seq, dim = 2, 8, 256
    x = jax.random.normal(k1, (batch, seq, dim), dtype=jnp.float32).astype(jnp.bfloat16)
    weight = jnp.zeros((dim,), dtype=jnp.float32)
    out = jax.block_until_ready(physionet_rmsnorm(x, weight, eps=1e-6))
    ref = _reference(x, weight, eps=1e-6)
    assert out.shape == x.shape and out.dtype == x.dtype
    assert jnp.allclose(out.astype(jnp.float32), ref.astype(jnp.float32),
                        atol=2e-2, rtol=2e-2)

    # Test 2: f32 activations, non-trivial weight, ragged row count (111 rows
    # -> partial last block; no host padding).
    x2 = jax.random.normal(k2, (3, 37, dim), dtype=jnp.float32)
    weight2 = 0.1 * jax.random.normal(k3, (dim,), dtype=jnp.float32)
    out2 = jax.block_until_ready(physionet_rmsnorm(x2, weight2, eps=1e-6))
    ref2 = _reference(x2, weight2, eps=1e-6)
    assert out2.shape == x2.shape and out2.dtype == x2.dtype
    assert jnp.allclose(out2, ref2, atol=1e-3, rtol=1e-3)

    # Test 3: bf16 activations with a ragged last block (115 rows), non-trivial
    # weight — exercises the OOB-read / masked-write path in low precision.
    x3 = jax.random.normal(k4, (5, 23, dim), dtype=jnp.float32).astype(jnp.bfloat16)
    out3 = jax.block_until_ready(physionet_rmsnorm(x3, weight2, eps=1e-6))
    ref3 = _reference(x3, weight2, eps=1e-6)
    assert out3.shape == x3.shape and out3.dtype == x3.dtype
    assert jnp.allclose(out3.astype(jnp.float32), ref3.astype(jnp.float32),
                        atol=2e-2, rtol=2e-2)

    print("KERNEL_OK")
</pallas_src>

<mosaic_0001>
module attributes {stable_mosaic.version = 11 : i64} {
  func.func @kernel(%arg0: i32, %arg1: memref<16x256xbf16, #tpu.memory_space<vmem>>, %arg2: memref<1x256xf32, #tpu.memory_space<vmem>>, %arg3: memref<16x256xbf16, #tpu.memory_space<vmem>>) attributes {dimension_semantics = [#tpu.dimension_semantics<parallel>], iteration_bounds = array<i64: 1>, scalar_prefetch = 0 : i64, scratch_operands = 0 : i64, tpu.core_type = #tpu.core_type<tc>, window_params = [{transform_indices = @transform_0, window_bounds = array<i64: 16, 256>}, {pipeline_mode = #tpu.pipeline_mode<synchronous>, transform_indices = @transform_1, window_bounds = array<i64: 1, 256>}, {transform_indices = @transform_2, window_bounds = array<i64: 16, 256>}]} {
    %c0 = arith.constant 0 : index
    %c0_0 = arith.constant 0 : index
    %0 = vector.load %arg1[%c0, %c0_0] : memref<16x256xbf16, #tpu.memory_space<vmem>>, vector<16x256xbf16>
    %1 = arith.extf %0 : vector<16x256xbf16> to vector<16x256xf32>
    %2 = arith.mulf %1, %1 : vector<16x256xf32>
    %cst = arith.constant dense<0.000000e+00> : vector<16xf32>
    %3 = vector.multi_reduction <add>, %2, %cst [1] : vector<16x256xf32> to vector<16xf32>
    %4 = vector.shape_cast %3 : vector<16xf32> to vector<16x1xf32>
    %cst_1 = arith.constant 2.560000e+02 : f32
    %5 = vector.broadcast %cst_1 : f32 to vector<16x1xf32>
    %6 = arith.divf %4, %5 : vector<16x1xf32>
    %cst_2 = arith.constant 9.99999997E-7 : f32
    %7 = vector.broadcast %cst_2 : f32 to vector<16x1xf32>
    %8 = arith.addf %6, %7 : vector<16x1xf32>
    %9 = math.rsqrt %8 : vector<16x1xf32>
    %10 = vector.broadcast %9 : vector<16x1xf32> to vector<16x256xf32>
    %11 = arith.mulf %1, %10 : vector<16x256xf32>
    %c0_3 = arith.constant 0 : index
    %c0_4 = arith.constant 0 : index
    %12 = vector.load %arg2[%c0_3, %c0_4] : memref<1x256xf32, #tpu.memory_space<vmem>>, vector<1x256xf32>
    %13 = vector.broadcast %12 : vector<1x256xf32> to vector<16x256xf32>
    %14 = arith.mulf %11, %13 : vector<16x256xf32>
    %15 = arith.truncf %14 : vector<16x256xf32> to vector<16x256xbf16>
    %c0_5 = arith.constant 0 : index
    %c0_6 = arith.constant 0 : index
    %16 = vector.load %arg3[%c0_5, %c0_6] : memref<16x256xbf16, #tpu.memory_space<vmem>>, vector<16x256xbf16>
    tpu.vector_store %arg3[%c0_5, %c0_6], %15 {strides = array<i32>} : memref<16x256xbf16, #tpu.memory_space<vmem>>, vector<16x256xbf16>,
    return
  }
  func.func @transform_0(%arg0: i32) -> (i32, i32) {
    %c0_i32 = arith.constant 0 : i32
    %c0_i32_0 = arith.constant 0 : i32
    return %arg0, %c0_i32 : i32, i32
  }
  func.func @transform_1(%arg0: i32) -> (i32, i32) {
    %c0_i32 = arith.constant 0 : i32
    %c0_i32_0 = arith.constant 0 : i32
    %c0_i32_1 = arith.constant 0 : i32
    return %c0_i32, %c0_i32_0 : i32, i32
  }
  func.func @transform_2(%arg0: i32) -> (i32, i32) {
    %c0_i32 = arith.constant 0 : i32
    %c0_i32_0 = arith.constant 0 : i32
    return %arg0, %c0_i32 : i32, i32
  }
}

</mosaic_0001>

<llo_original>
// kernel: tpu_custom_call.1
$region0: #{tpu_custom_call.1}
  #allocation0 [shape = 'u32[]', space=smem, size = 0x4, offset = 0x4, fixed_abs, tag = 'smem constant byte address 0x4 - core index']
  #allocation1 [shape = 'u32[72,128]{1,0:T(1,128)}', space=vmem, size = 0x9000, scoped, tag = 'internal scratch']
  %s0 = inlined_call_operand.hbm [shape: bf16[16,256], index: 0, kind: input, shape index: {}]
  %s1 = inlined_call_operand.hbm [shape: f32[1,256], index: 1, kind: input, shape index: {}]
  %s2 = inlined_call_operand.hbm [shape: bf16[16,256], index: 2, kind: output, shape index: {}]
  %s3 = sld [smem:[#allocation0]]
  $region26: #{tpu_custom_call.1} parent=0
    _
  %s5 = ssub.s32 1, %s3
  %s6 = scalar_select 0, %s5, %s3
  $region1: #{tpu_custom_call.1} parent=0
    #allocation2 [shape = 'u8[8192]{0}', space=vmem, size = 0x2000, scoped, tag = 'input window, operand 0, single buffered']
    #allocation3 [shape = 's32[1]{0}', space=sflag, size = 0x4, scoped, tag = 'scoped memory for tpu_custom_call.1']
    #allocation4 [shape = 's32[1]{0}', space=sflag, size = 0x4, scoped, tag = 'scoped memory for tpu_custom_call.1']
    #allocation5 [shape = 'u8[1024]{0}', space=vmem, size = 0x400, scoped, tag = 'input window, operand 1, single buffered']
    #allocation6 [shape = 's32[1]{0}', space=sflag, size = 0x4, scoped, tag = 'scoped memory for tpu_custom_call.1']
    #allocation7 [shape = 'u8[8192]{0}', space=vmem, size = 0x2000, scoped, tag = 'output window, operand 0, single buffered']
    %7 = vsyncpa [#allocation3], 0
    %8 = vsyncpa [#allocation6], 0
    %9 = vsyncpa [#allocation4], 0
    // Predicated region
    $region2: #{tpu_custom_call.1} parent=1 // pred_check
      _
    $region3: #{tpu_custom_call.1} parent=1 // pred_check_branch
      %11 = sbr.rel (0) target = $region5
    $region4: #{tpu_custom_call.1} parent=1 // pred_region
      %13 = vsyncadd [#allocation3], 0
      %s14 = sshll.u32 %s0, 4
      %s15 = int_to_ptr.hbm [resolvable:$true] %s14
      %s16 = sshll.u32 [#allocation2], 4
      %s17 = int_to_ptr.vmem [resolvable:$true] %s16
      %22 = dma.hbm_to_vmem [thread:$0]  %s15, 256, %s17, [#allocation3], 128, 128, 8
    $region5: #{tpu_custom_call.1} parent=1 // pred_fallthru
      _
    // Predicated region
    $region6: #{tpu_custom_call.1} parent=1 // pred_check
      _
    $region7: #{tpu_custom_call.1} parent=1 // pred_check_branch
      %24 = sbr.rel (0) target = $region9
    $region8: #{tpu_custom_call.1} parent=1 // pred_region
      %26 = vsyncadd [#allocation6], 0
      %s28 = sshll.u32 %s1, 4
      %s29 = int_to_ptr.hbm [resolvable:$true] %s28
      %s30 = sshll.u32 [#allocation5], 4
      %s31 = int_to_ptr.vmem [resolvable:$true] %s30
      %33 = dma.hbm_to_vmem [thread:$0]  %s29, 32, %s31, [#allocation6]
    $region9: #{tpu_custom_call.1} parent=1 // pred_fallthru
      _
    // Predicated region
    $region10: #{tpu_custom_call.1} parent=1 // pred_check
      _
    $region11: #{tpu_custom_call.1} parent=1 // pred_check_branch
      %35 = sbr.rel (0) target = $region13
    $region12: #{tpu_custom_call.1} parent=1 // pred_region
      %37 = dma.done [#allocation3], 256
    $region13: #{tpu_custom_call.1} parent=1 // pred_fallthru
      _
    // Predicated region
    $region14: #{tpu_custom_call.1} parent=1 // pred_check
      _
    $region15: #{tpu_custom_call.1} parent=1 // pred_check_branch
      %39 = sbr.rel (0) target = $region17
    $region16: #{tpu_custom_call.1} parent=1 // pred_region
      %41 = dma.done [#allocation6], 32
    $region17: #{tpu_custom_call.1} parent=1 // pred_fallthru
      _
    %v42 = vld [vmem:[#allocation2] sm:$0xff]
    %v43 = vld [vmem:[#allocation2 + $0x8] sm:$0xff]
    %v44 = vunpack.c.l.bf16 %v42
    %v45 = vunpack.c.h.bf16 %v42
    %v46 = vunpack.c.l.bf16 %v43
    %v47 = vunpack.c.h.bf16 %v43
    %v48 = vmul.f32 %v44, %v44
    %v49 = vmul.f32 %v45, %v45
    %v50 = vmul.f32 %v46, %v46
    %v51 = vmul.f32 %v47, %v47
    %v52 = vadd.f32 %v48, %v49
    %53 = vadd.xlane.f32.xlu0 %v52
    %v54 = vpop.xlane.xlu0 %53
    %v55 = vadd.f32 %v50, %v51
    %56 = vadd.xlane.f32.xlu0 %v55
    %v57 = vpop.xlane.xlu0 %56
    %v58 = vrcp.pop 256.0
    %v59 = vmul.f32 256.0, %v58
    %v60 = vsub.f32 1.0, %v59
    %v61 = vmul.f32 %v58, %v60
    %v62 = vadd.f32 %v58, %v61
    %vm63 = vweird.f32 %v58
    %v64 = vsel %vm63, %v58, %v62
    %v65 = vmul.f32 %v54, %v64
    %v66 = vmul.f32 %v57, %v64
    %v67 = vadd.f32 %v65, 1e-06
    %v68 = vadd.f32 %v66, 1e-06
    %v69 = vrsqrt.pop %v67
    %v70 = vmul.f32 %v69, %v67
    %v71 = vmul.f32 %v70, %v69
    %v72 = vmul.f32 0.5, %v71
    %v73 = vsub.f32 1.5, %v72
    %v74 = vmul.f32 %v69, %v73
    %vm75 = vweird.f32 %v67
    %vm76 = vweird.f32 %v69
    %vm77 = vmor %vm75, %vm76
    %v78 = vsel %vm77, %v69, %v74
    %v79 = vrsqrt.pop %v68
    %v80 = vmul.f32 %v79, %v68
    %v81 = vmul.f32 %v80, %v79
    %v82 = vmul.f32 0.5, %v81
    %v83 = vsub.f32 1.5, %v82
    %v84 = vmul.f32 %v79, %v83
    %vm85 = vweird.f32 %v68
    %vm86 = vweird.f32 %v79
    %vm87 = vmor %vm85, %vm86
    %v88 = vsel %vm87, %v79, %v84
    %v89 = vmul.f32 %v44, %v78
    %v90 = vmul.f32 %v45, %v78
    %v91 = vmul.f32 %v46, %v88
    %v92 = vmul.f32 %v47, %v88
    %v93 = vld [vmem:[#allocation5] sm:$0x3]
    %v95 = vperm.slane %v93, 0
    %v96 = vperm.slane %v93, 1
    %v99 = vmul.f32 %v89, %v95
    %v100 = vmul.f32 %v90, %v96
    %v101 = vmul.f32 %v91, %v95
    %v102 = vmul.f32 %v92, %v96
    %v103 = vpack.c.bf16 %v100, %v99
    %v104 = vpack.c.bf16 %v102, %v101
    %105 = vst [vmem:[#allocation7] sm:$0xff] %v103
    %106 = vst [vmem:[#allocation7 + $0x8] sm:$0xff] %v104
    // Predicated region
    $region18: #{tpu_custom_call.1} parent=1 // pred_check
      _
    $region19: #{tpu_custom_call.1} parent=1 // pred_check_branch
      %108 = sbr.rel (0) target = $region21
    $region20: #{tpu_custom_call.1} parent=1 // pred_region
      %110 = vsyncadd [#allocation4], 0
      %s111 = sshll.u32 [#allocation7], 4
      %s112 = int_to_ptr.vmem [resolvable:$true] %s111
      %s113 = sshll.u32 %s2, 4
      %s114 = int_to_ptr.hbm [resolvable:$true] %s113
      %119 = dma.vmem_to_hbm [thread:$0]  %s112, 256, %s114, [#allocation4], 128, 128, 8
    $region21: #{tpu_custom_call.1} parent=1 // pred_fallthru
      _
    // Predicated region
    $region22: #{tpu_custom_call.1} parent=1 // pred_check
      _
    $region23: #{tpu_custom_call.1} parent=1 // pred_check_branch
      %121 = sbr.rel (0) target = $region25
    $region24: #{tpu_custom_call.1} parent=1 // pred_region
      %123 = dma.done [#allocation4], 256
    $region25: #{tpu_custom_call.1} parent=1 // pred_fallthru
      _
    %124 = vsyncpa [#allocation3], 1
    %125 = vsyncpa [#allocation6], 1
    %126 = vsyncpa [#allocation4], 1

</llo_original>
